<compile_context>
chip_gen: v6e
topology: v6e:2x2x1
jax: 0.10.0
libtpu: 0.0.40
codegen_flags: <defaults>
</compile_context>

<pallas_src>
import functools
import math

import jax
import jax.numpy as jnp
from jax.experimental import pallas as pl
from jax.experimental.pallas import tpu as pltpu


# ----------------------------------------------------------------------------
# Device-dependent tile width (v5e MXU is 128-wide)
# ----------------------------------------------------------------------------
def _detect_v5e():
    try:
        kind = jax.devices()[0].device_kind.lower()
        return ("v5 lite" in kind) or ("v5e" in kind) or ("v5lite" in kind)
    except Exception:
        return False


_IS_V5E = _detect_v5e()
_VMEM_LIMIT = 48 * 1024 * 1024   # < v7x 64MiB physical; > 32MiB default scope


def _pad128(c):
    return ((c + 127) // 128) * 128


def _pick_tm(nhw):
    """M (rows) tile: full block for small NHW, tile for big NHW."""
    if nhw <= 512:
        return nhw
    for tm in (512, 256, 128, 8):
        if nhw % tm == 0:
            return tm
    return nhw


def _pick_tn(cout_pad):
    if _IS_V5E:
        return 128
    return 256 if cout_pad % 256 == 0 else 128


# ----------------------------------------------------------------------------
# Pallas kernels
# ----------------------------------------------------------------------------
def _conv_kernel(x_ref, w_ref, s_ref, t_ref, o_ref, *, relu):
    """One (M-tile, Cout-tile) grid cell of conv-as-matmul.

    x_ref: (TM, K)  bf16 im2col patch block (K = ks*ks*Cin, full contraction)
    w_ref: (K, TN)  bf16 weight block
    s_ref: (1, TN)  f32 folded BN scale
    t_ref: (1, TN)  f32 folded BN shift (conv bias pre-folded in)
    o_ref: (TM, TN) f32 output block
    """
    acc = jnp.dot(x_ref[...], w_ref[...], preferred_element_type=jnp.float32)
    y = acc * s_ref[...] + t_ref[...]
    if relu:
        y = jnp.maximum(y, 0.0)
    o_ref[...] = y


def _fuse_kernel(seg_ref, pb_ref, o_ref):
    # final_seg = seg + seg * pred_boundary
    o_ref[...] = seg_ref[...] * (1.0 + pb_ref[...])


# ----------------------------------------------------------------------------
# Conv wrapper (Pallas)
# ----------------------------------------------------------------------------
def pallas_conv(x, w, scale, shift, cout, *, ksize, dilation=1, relu=False):
    """x: (N,H,W,Cin); w: (ks*ks*Cin, Cout_pad) bf16; scale/shift: (1,Cout_pad).

    Returns (N,H,W,cout) f32.
    """
    N, H, W, Cin = x.shape
    K, cout_pad = w.shape
    assert K == ksize * ksize * Cin, (K, ksize, Cin)
    assert cout_pad % 128 == 0
    NHW = N * H * W

    xb = x.astype(jnp.bfloat16)
    if ksize == 1:
        patches = xb.reshape(NHW, Cin)
    else:
        pad = dilation * (ksize // 2)
        xp = jnp.pad(xb, ((0, 0), (pad, pad), (pad, pad), (0, 0)))
        cols = [xp[:, kh * dilation:kh * dilation + H,
                   kw * dilation:kw * dilation + W, :]
                for kh in range(ksize) for kw in range(ksize)]
        patches = jnp.concatenate(cols, axis=-1).reshape(NHW, K)

    TM = _pick_tm(NHW)
    TN = _pick_tn(cout_pad)
    assert NHW % TM == 0 and cout_pad % TN == 0
    grid = (NHW // TM, cout_pad // TN)

    kernel = functools.partial(_conv_kernel, relu=relu)
    out = pl.pallas_call(
        kernel,
        out_shape=jax.ShapeDtypeStruct((NHW, cout_pad), jnp.float32),
        grid=grid,
        in_specs=[
            pl.BlockSpec((TM, K), lambda i, j: (i, 0)),
            pl.BlockSpec((K, TN), lambda i, j: (0, j)),
            pl.BlockSpec((1, TN), lambda i, j: (0, j)),
            pl.BlockSpec((1, TN), lambda i, j: (0, j)),
        ],
        out_specs=pl.BlockSpec((TM, TN), lambda i, j: (i, j)),
        compiler_params=pltpu.CompilerParams(
            dimension_semantics=("parallel", "parallel"),
            vmem_limit_bytes=_VMEM_LIMIT),
    )(patches, w, scale, shift)

    out = out.reshape(N, H, W, cout_pad)
    if cout != cout_pad:
        out = out[..., :cout]
    return out


def pallas_fuse(seg, pred_boundary):
    total = seg.size
    if total % 128 != 0:
        return seg * (1.0 + pred_boundary)     # tiny fallback
    rows = total // 128
    s2 = seg.reshape(rows, 128)
    p2 = pred_boundary.reshape(rows, 128)
    out = pl.pallas_call(
        _fuse_kernel,
        out_shape=jax.ShapeDtypeStruct((rows, 128), seg.dtype),
        grid=(1,),
        in_specs=[pl.BlockSpec((rows, 128), lambda i: (0, 0)),
                  pl.BlockSpec((rows, 128), lambda i: (0, 0))],
        out_specs=pl.BlockSpec((rows, 128), lambda i: (0, 0)),
    )(s2, p2)
    return out.reshape(seg.shape)


# ----------------------------------------------------------------------------
# JAX glue: maxpool / bilinear resize
# ----------------------------------------------------------------------------
def maxpool2(x):
    N, H, W, C = x.shape
    assert H % 2 == 0 and W % 2 == 0
    return x.reshape(N, H // 2, 2, W // 2, 2, C).max(axis=(2, 4))


def _coords(out_size, in_size, align_corners):
    i = jnp.arange(out_size, dtype=jnp.float32)
    if align_corners:
        if out_size > 1:
            src = i * ((in_size - 1) / (out_size - 1))
        else:
            src = jnp.zeros_like(i)
    else:
        src = (i + 0.5) * (in_size / out_size) - 0.5
        src = jnp.maximum(src, 0.0)
    src = jnp.minimum(src, float(in_size - 1))
    lo = jnp.floor(src).astype(jnp.int32)
    hi = jnp.minimum(lo + 1, in_size - 1)
    frac = src - lo.astype(jnp.float32)
    return lo, hi, frac


def bilinear_resize(x, out_h, out_w, align_corners):
    N, H, W, C = x.shape
    y0, y1, fy = _coords(out_h, H, align_corners)
    x0, x1, fx = _coords(out_w, W, align_corners)
    fy = fy[None, :, None, None]
    fx = fx[None, None, :, None]
    row = x[:, y0] * (1.0 - fy) + x[:, y1] * fy          # (N, out_h, W, C)
    out = row[:, :, x0] * (1.0 - fx) + row[:, :, x1] * fx
    return out


# ----------------------------------------------------------------------------
# Parameter construction (deterministic, kaiming-normal weights, zero biases,
# BatchNorm gamma=1 / beta=0 / running_mean=0 / running_var=1, eps=1e-5).
# Weights are stored pre-reshaped to (ks*ks*Cin, Cout_pad) bf16 with Cout
# padded to a multiple of 128; conv bias is pre-folded into `shift`.
# ----------------------------------------------------------------------------
def make_params():
    keys = iter(jax.random.split(jax.random.PRNGKey(42), 64))

    def conv_p(ks, cin, cout, bn=False):
        k = next(keys)
        std = math.sqrt(2.0 / (cin * ks * ks))
        cout_p = _pad128(cout)
        w = jax.random.normal(k, (ks * ks * cin, cout), jnp.float32) * std
        w = jnp.pad(w, ((0, 0), (0, cout_p - cout))).astype(jnp.bfloat16)
        scale = jnp.ones((1, cout_p), jnp.float32)
        if bn:
            scale = scale.at[:, :cout].set(1.0 / math.sqrt(1.0 + 1e-5))
        # shift = bias * scale + beta - mean*scale*gamma == 0 here
        shift = jnp.zeros((1, cout_p), jnp.float32)
        return {"w": w, "scale": scale, "shift": shift, "cout": cout, "ks": ks}

    def hl_fused_p():
        # sar_high_level_down + opt_high_level_down fused into one 1x1 conv on
        # the channel-concatenated en5 features (block-diagonal weight).
        k1, k2 = next(keys), next(keys)
        std = math.sqrt(2.0 / 2048)
        ws = jax.random.normal(k1, (2048, 256), jnp.float32) * std
        wo = jax.random.normal(k2, (2048, 256), jnp.float32) * std
        w = jnp.zeros((4096, 512), jnp.float32)
        w = w.at[:2048, :256].set(ws)
        w = w.at[2048:, 256:].set(wo)
        return {"w": w.astype(jnp.bfloat16),
                "scale": jnp.ones((1, 512), jnp.float32),
                "shift": jnp.zeros((1, 512), jnp.float32),
                "cout": 512, "ks": 1}

    p = {}
    # encoders
    p["sar_en1"] = conv_p(3, 1, 64, bn=True)
    p["sar_en2"] = conv_p(3, 64, 256, bn=True)
    p["sar_en3"] = conv_p(3, 256, 512, bn=True)
    p["sar_en4"] = conv_p(3, 512, 1024, bn=True)
    p["sar_en5"] = conv_p(3, 1024, 2048, bn=True)
    p["opt_en1"] = conv_p(3, 3, 64, bn=True)
    p["opt_en2"] = conv_p(3, 64, 256, bn=True)
    p["opt_en3"] = conv_p(3, 256, 512, bn=True)
    p["opt_en4"] = conv_p(3, 512, 1024, bn=True)
    p["opt_en5"] = conv_p(3, 1024, 2048, bn=True)
    # ASPP (canonical DeepLabV3)
    p["aspp_b0"] = conv_p(1, 512, 256, bn=True)
    p["aspp_b1"] = conv_p(3, 512, 256, bn=True)
    p["aspp_b2"] = conv_p(3, 512, 256, bn=True)
    p["aspp_b3"] = conv_p(3, 512, 256, bn=True)
    p["aspp_pool"] = conv_p(1, 512, 256, bn=True)
    p["aspp_proj"] = conv_p(1, 256 * 5, 256)
    # heads / fusion
    p["low_level_down"] = conv_p(1, 512, 48)
    p["hl_down"] = hl_fused_p()
    p["conv_low_high"] = conv_p(3, 304, 256)
    p["seg"] = conv_p(3, 256, 1)
    p["locseghead"] = conv_p(3, 512, 1)
    # BSM modules (canonical)
    for i, c in zip((1, 2, 3, 4), (64, 256, 512, 1024)):
        p[f"bsm{i}_feat"] = conv_p(3, c, c, bn=True)
        p[f"bsm{i}_pred"] = conv_p(3, c, 1)
    p["bounconv"] = conv_p(1, 4, 1)
    return p


# ----------------------------------------------------------------------------
# Forward
# ----------------------------------------------------------------------------
def _conv(x, pp, *, dilation=1, relu=False):
    return pallas_conv(x, pp["w"], pp["scale"], pp["shift"], pp["cout"],
                       ksize=pp["ks"], dilation=dilation, relu=relu)


def _encoder(x, pp, pool):
    y = _conv(x, pp, relu=True)
    return maxpool2(y) if pool else y


def _aspp(x, p, rates=(6, 12, 18)):
    b0 = _conv(x, p["aspp_b0"], relu=True)
    b1 = _conv(x, p["aspp_b1"], dilation=rates[0], relu=True)
    b2 = _conv(x, p["aspp_b2"], dilation=rates[1], relu=True)
    b3 = _conv(x, p["aspp_b3"], dilation=rates[2], relu=True)
    gp = jnp.mean(x, axis=(1, 2), keepdims=True)
    b4 = _conv(gp, p["aspp_pool"], relu=True)
    b4 = bilinear_resize(b4, x.shape[1], x.shape[2], align_corners=False)
    cat = jnp.concatenate([b0, b1, b2, b3, b4], axis=-1)
    return _conv(cat, p["aspp_proj"], relu=False)


def _bsm(x, p_feat, p_pred):
    feat = _conv(x, p_feat, relu=True)
    pred = _conv(feat, p_pred, relu=False)
    return feat, pred


def zznet_forward(sar_nchw, opt_nchw, p):
    sar = jnp.transpose(sar_nchw, (0, 2, 3, 1))
    opt = jnp.transpose(opt_nchw, (0, 2, 3, 1))

    # SAR encoder (conv+BN+ReLU+maxpool each stage)
    sar_en1 = _encoder(sar, p["sar_en1"], pool=True)
    sar_en2 = _encoder(sar_en1, p["sar_en2"], pool=True)
    sar_en3 = _encoder(sar_en2, p["sar_en3"], pool=True)
    sar_en4 = _encoder(sar_en3, p["sar_en4"], pool=True)
    sar_en5 = _encoder(sar_en4, p["sar_en5"], pool=True)

    # OPT encoder (pooling done outside the blocks, matching ZZNet.forward)
    opt_en1 = _encoder(opt, p["opt_en1"], pool=False)
    opt_en1_pool = maxpool2(opt_en1)
    opt_en2 = _encoder(opt_en1_pool, p["opt_en2"], pool=False)
    opt_en2_pool = maxpool2(opt_en2)
    opt_en3 = _encoder(opt_en2_pool, p["opt_en3"], pool=False)
    opt_en3_pool = maxpool2(opt_en3)
    opt_en4 = _encoder(opt_en3_pool, p["opt_en4"], pool=False)
    opt_en4_pool = maxpool2(opt_en4)
    opt_en5 = _encoder(opt_en4_pool, p["opt_en5"], pool=True)

    # low / high level features
    low_level = _conv(jnp.concatenate([sar_en2, opt_en2_pool], axis=-1),
                      p["low_level_down"], relu=False)
    # sar_high_level_down + opt_high_level_down fused into one pallas_call
    high_level = _conv(jnp.concatenate([sar_en5, opt_en5], axis=-1),
                       p["hl_down"], relu=False)

    loc_seg = _conv(high_level, p["locseghead"], relu=False)
    loc_seg = bilinear_resize(loc_seg, opt_en1.shape[1], opt_en1.shape[2],
                              align_corners=False)

    high_level = _aspp(high_level, p)
    high_level = bilinear_resize(high_level, sar_en2.shape[1], sar_en2.shape[2],
                                 align_corners=False)

    low_high = jnp.concatenate([low_level, high_level], axis=-1)
    low_high_feature = _conv(low_high, p["conv_low_high"], relu=False)

    seg = _conv(low_high_feature, p["seg"], relu=False)
    seg = bilinear_resize(seg, seg.shape[1] * 4, seg.shape[2] * 4,
                          align_corners=True)     # nn.Upsample(scale=4, align_corners=True)

    # BSM boundary branch
    _, pred1 = _bsm(opt_en1, p["bsm1_feat"], p["bsm1_pred"])
    _, pred2 = _bsm(opt_en2, p["bsm2_feat"], p["bsm2_pred"])
    pred2 = bilinear_resize(pred2, pred1.shape[1], pred1.shape[2], align_corners=False)
    _, pred3 = _bsm(opt_en3, p["bsm3_feat"], p["bsm3_pred"])
    pred3 = bilinear_resize(pred3, pred1.shape[1], pred1.shape[2], align_corners=False)
    _, pred4 = _bsm(opt_en4, p["bsm4_feat"], p["bsm4_pred"])
    pred4 = bilinear_resize(pred4, pred1.shape[1], pred1.shape[2], align_corners=False)

    predboun = jnp.concatenate([pred1, pred2, pred3, pred4], axis=-1)
    pred_boundary = _conv(predboun, p["bounconv"], relu=False)

    final_seg = pallas_fuse(seg, pred_boundary)

    to_nchw = lambda t: jnp.transpose(t, (0, 3, 1, 2))
    return (to_nchw(seg), to_nchw(loc_seg), to_nchw(pred_boundary),
            to_nchw(final_seg))


# ----------------------------------------------------------------------------
if __name__ == "__main__":
    key = jax.random.PRNGKey(0)
    k_sar, k_opt = jax.random.split(key)
    # Small spatial (32x32) so five 2x downsamples bottom out at 1x1.
    sar = jax.random.normal(k_sar, (1, 1, 32, 32), jnp.float32)
    opt = jax.random.normal(k_opt, (1, 3, 32, 32), jnp.float32)

    params = make_params()
    outs = zznet_forward(sar, opt, params)
    outs = jax.block_until_ready(outs)

    assert outs[0].shape == (1, 1, 32, 32)
    assert outs[1].shape == (1, 1, 32, 32)
    assert outs[2].shape == (1, 1, 32, 32)
    assert outs[3].shape == (1, 1, 32, 32)
    print("KERNEL_OK")
</pallas_src>

<mosaic_0001>
module attributes {stable_mosaic.version = 11 : i64} {
  func.func @_conv_kernel(%arg0: i32, %arg1: i32, %arg2: memref<512x9xbf16, #tpu.memory_space<vmem>>, %arg3: memref<9x128xbf16, #tpu.memory_space<vmem>>, %arg4: memref<1x128xf32, #tpu.memory_space<vmem>>, %arg5: memref<1x128xf32, #tpu.memory_space<vmem>>, %arg6: memref<512x128xf32, #tpu.memory_space<vmem>>) attributes {dimension_semantics = [#tpu.dimension_semantics<parallel>, #tpu.dimension_semantics<parallel>], iteration_bounds = array<i64: 2, 1>, scalar_prefetch = 0 : i64, scratch_operands = 0 : i64, tpu.core_type = #tpu.core_type<tc>, window_params = [{transform_indices = @transform_0, window_bounds = array<i64: 512, 9>}, {transform_indices = @transform_1, window_bounds = array<i64: 9, 128>}, {transform_indices = @transform_2, window_bounds = array<i64: 1, 128>}, {transform_indices = @transform_3, window_bounds = array<i64: 1, 128>}, {transform_indices = @transform_4, window_bounds = array<i64: 512, 128>}]} {
    %c0 = arith.constant 0 : index
    %c0_0 = arith.constant 0 : index
    %0 = vector.load %arg2[%c0, %c0_0] : memref<512x9xbf16, #tpu.memory_space<vmem>>, vector<512x9xbf16>
    %c0_1 = arith.constant 0 : index
    %c0_2 = arith.constant 0 : index
    %1 = vector.load %arg3[%c0_1, %c0_2] : memref<9x128xbf16, #tpu.memory_space<vmem>>, vector<9x128xbf16>
    %cst = arith.constant dense<0.000000e+00> : vector<512x128xf32>
    %2 = tpu.matmul %0, %1, %cst {dimension_numbers = #tpu.dot_dimension_numbers<[1], [0], [0], [1], [0, 0, 1, 1], [], []>} : vector<512x9xbf16>, vector<9x128xbf16>, vector<512x128xf32> -> vector<512x128xf32>
    %c0_3 = arith.constant 0 : index
    %c0_4 = arith.constant 0 : index
    %3 = vector.load %arg4[%c0_3, %c0_4] : memref<1x128xf32, #tpu.memory_space<vmem>>, vector<1x128xf32>
    %4 = vector.broadcast %3 : vector<1x128xf32> to vector<512x128xf32>
    %5 = arith.mulf %2, %4 : vector<512x128xf32>
    %c0_5 = arith.constant 0 : index
    %c0_6 = arith.constant 0 : index
    %6 = vector.load %arg5[%c0_5, %c0_6] : memref<1x128xf32, #tpu.memory_space<vmem>>, vector<1x128xf32>
    %7 = vector.broadcast %6 : vector<1x128xf32> to vector<512x128xf32>
    %8 = arith.addf %5, %7 : vector<512x128xf32>
    %cst_7 = arith.constant 0.000000e+00 : f32
    %9 = vector.broadcast %cst_7 : f32 to vector<512x128xf32>
    %10 = arith.maximumf %8, %9 : vector<512x128xf32>
    %c0_8 = arith.constant 0 : index
    %c0_9 = arith.constant 0 : index
    %11 = vector.load %arg6[%c0_8, %c0_9] : memref<512x128xf32, #tpu.memory_space<vmem>>, vector<512x128xf32>
    tpu.vector_store %arg6[%c0_8, %c0_9], %10 {strides = array<i32>} : memref<512x128xf32, #tpu.memory_space<vmem>>, vector<512x128xf32>,
    return
  }
  func.func @transform_0(%arg0: i32, %arg1: i32) -> (i32, i32) {
    %c0_i32 = arith.constant 0 : i32
    %c0_i32_0 = arith.constant 0 : i32
    return %arg0, %c0_i32 : i32, i32
  }
  func.func @transform_1(%arg0: i32, %arg1: i32) -> (i32, i32) {
    %c0_i32 = arith.constant 0 : i32
    %c0_i32_0 = arith.constant 0 : i32
    return %c0_i32, %arg1 : i32, i32
  }
  func.func @transform_2(%arg0: i32, %arg1: i32) -> (i32, i32) {
    %c0_i32 = arith.constant 0 : i32
    %c0_i32_0 = arith.constant 0 : i32
    return %c0_i32, %arg1 : i32, i32
  }
  func.func @transform_3(%arg0: i32, %arg1: i32) -> (i32, i32) {
    %c0_i32 = arith.constant 0 : i32
    %c0_i32_0 = arith.constant 0 : i32
    return %c0_i32, %arg1 : i32, i32
  }
  func.func @transform_4(%arg0: i32, %arg1: i32) -> (i32, i32) {
    %c0_i32 = arith.constant 0 : i32
    return %arg0, %arg1 : i32, i32
  }
}

</mosaic_0001>

<llo_original>
// kernel: tpu_custom_call.1
$region0: #{tpu_custom_call.1}
  #allocation0 [shape = 'u32[]', space=smem, size = 0x4, offset = 0x4, fixed_abs, tag = 'smem constant byte address 0x4 - core index']
  #allocation1 [shape = 'u32[144,128]{1,0:T(1,128)}', space=vmem, size = 0x12000, scoped, tag = 'internal scratch']
  %s0 = inlined_call_operand.vmem [shape: bf16[1024,9], index: 0, kind: input, shape index: {}]
  %s1 = inlined_call_operand.vmem [shape: bf16[9,128], index: 1, kind: input, shape index: {}]
  %s2 = inlined_call_operand.vmem [shape: f32[1,128], index: 2, kind: input, shape index: {}]
  %s3 = inlined_call_operand.vmem [shape: f32[1,128], index: 3, kind: input, shape index: {}]
  %s4 = inlined_call_operand.hbm [shape: f32[1024,128], index: 4, kind: output, shape index: {}]
  %s5 = sld [smem:[#allocation0]]
  $region49: #{tpu_custom_call.1} parent=0
    _
  %s7 = ssub.s32 1, %s5
  %s8 = scalar_select 0, %s7, %s5
  $region1: #{tpu_custom_call.1} parent=0
    #allocation2 [shape = 'u8[524288]{0}', space=vmem, size = 0x80000, scoped, tag = 'output window, operand 0']
    #allocation3 [shape = 's32[2]{0}', space=sflag, size = 0x8, scoped, tag = 'scoped memory for tpu_custom_call.1']
    %9 = vsyncpa [#allocation3], 0
    %s10 = scalar_lea.sflag [#allocation3], 1
    %11 = vsyncpa %s10, 0
    loop: start=0, step=1, limit=4
    $region2: #{tpu_custom_call.1} parent=1 // loop_pre_header
      _
    $region3: #{tpu_custom_call.1} parent=1 // loop_header
      %s13 = sphi 0, %s17
      %p14 = scmp.ge.s32.totalorder %s13, 4
      %s20 = sphi 0, %s32
      %s21 = sphi 0, %s28
      %s22 = sphi 0, %s20
      %s23 = sphi 0, %s21
      %s24 = sphi 0, %s22
      %s25 = sphi 0, %s23
      %s35 = sphi 0, %s37
      %s38 = sphi 0, %s35
      %s39 = sphi 0, %s38
      %s55 = sphi 0, %s39
      %s61 = sphi 0, %s63
      %s64 = sphi 0, %s61
      %s65 = sphi 0, %s64
      %s81 = sphi 0, %s65
      %s87 = sphi 0, %s89
      %s90 = sphi 0, %s87
      %s91 = sphi 0, %s90
      %s107 = sphi 0, %s91
      %s113 = sphi 0, %s115
      %s116 = sphi 0, %s113
      %s117 = sphi 0, %s116
      %s133 = sphi 0, %s117
      %s141 = sphi 0, %s143
      %s144 = sphi 0, %s141
      %s145 = sphi 0, %s144
      %s161 = sphi 0, %s145
    $region4: #{tpu_custom_call.1} parent=1 // loop_header_branch
      %16 = sbr.rel (%p14) target = $region8
    $region5: #{tpu_custom_call.1} parent=1 // loop_body
      %s18 = ssub.s32 %s13, 1
      %s19 = ssub.s32 %s13, 2
      %s26 = sadd.s32 1, %s21
      %p27 = scmp.ge.s32.totalorder %s26, 1
      %s28 = scalar_select %p27, 0, %s26
      %s29 = sadd.s32 1, %s20
      %s30 = scalar_select %p27, %s29, %s20
      %p31 = scmp.ge.s32.totalorder %s30, 2
      %s32 = scalar_select %p31, 0, %s30
      %s33 = ssub.s32 %s20, %s32
      %p34 = scmp.eq.s32.totalorder %s33, 0
      %s36 = sadd.s32 %s35, 1
      %s37 = scalar_select %p34, %s35, %s36
      %p40 = pneg %p34
      %p41 = scmp.eq.s32.totalorder %s13, 1
      %p42 = por %p40, %p41
      %p43 = scmp.ne.s32.totalorder %s35, %s38
      %p44 = scmp.eq.s32.totalorder %s13, 0
      %p45 = por %p43, %p44
      %p46 = scmp.ne.s32.totalorder %s35, %s38
      %p47 = scmp.eq.s32.totalorder %s18, 1
      %p48 = por %p46, %p47
      %p49 = scmp.ne.s32.totalorder %s38, %s39
      %p50 = scmp.eq.s32.totalorder %s18, 0
      %p51 = por %p49, %p50
      %p52 = scmp.ne.s32.totalorder %s38, %s39
      %p53 = scmp.eq.s32.totalorder %s19, 1
      %p54 = por %p52, %p53
      %p56 = scmp.ne.s32.totalorder %s39, %s55
      %p57 = scmp.eq.s32.totalorder %s19, 0
      %p58 = por %p56, %p57
      %s59 = ssub.s32 %s21, %s28
      %p60 = scmp.eq.s32.totalorder %s59, 0
      %s62 = sadd.s32 %s61, 1
      %s63 = scalar_select %p60, %s61, %s62
      %p66 = pneg %p60
      %p67 = scmp.eq.s32.totalorder %s13, 1
      %p68 = por %p66, %p67
      %p69 = scmp.ne.s32.totalorder %s61, %s64
      %p70 = scmp.eq.s32.totalorder %s13, 0
      %p71 = por %p69, %p70
      %p72 = scmp.ne.s32.totalorder %s61, %s64
      %p73 = scmp.eq.s32.totalorder %s18, 1
      %p74 = por %p72, %p73
      %p75 = scmp.ne.s32.totalorder %s64, %s65
      %p76 = scmp.eq.s32.totalorder %s18, 0
      %p77 = por %p75, %p76
      %p78 = scmp.ne.s32.totalorder %s64, %s65
      %p79 = scmp.eq.s32.totalorder %s19, 1
      %p80 = por %p78, %p79
      %p82 = scmp.ne.s32.totalorder %s65, %s81
      %p83 = scmp.eq.s32.totalorder %s19, 0
      %p84 = por %p82, %p83
      %s85 = ssub.s32 %s21, %s28
      %p86 = scmp.eq.s32.totalorder %s85, 0
      %s88 = sadd.s32 %s87, 1
      %s89 = scalar_select %p86, %s87, %s88
      %p92 = pneg %p86
      %p93 = scmp.eq.s32.totalorder %s13, 1
      %p94 = por %p92, %p93
      %p95 = scmp.ne.s32.totalorder %s87, %s90
      %p96 = scmp.eq.s32.totalorder %s13, 0
      %p97 = por %p95, %p96
      %p98 = scmp.ne.s32.totalorder %s87, %s90
      %p99 = scmp.eq.s32.totalorder %s18, 1
      %p100 = por %p98, %p99
      %p101 = scmp.ne.s32.totalorder %s90, %s91
      %p102 = scmp.eq.s32.totalorder %s18, 0
      %p103 = por %p101, %p102
      %p104 = scmp.ne.s32.totalorder %s90, %s91
      %p105 = scmp.eq.s32.totalorder %s19, 1
      %p106 = por %p104, %p105
      %p108 = scmp.ne.s32.totalorder %s91, %s107
      %p109 = scmp.eq.s32.totalorder %s19, 0
      %p110 = por %p108, %p109
      %s111 = ssub.s32 %s21, %s28
      %p112 = scmp.eq.s32.totalorder %s111, 0
      %s114 = sadd.s32 %s113, 1
      %s115 = scalar_select %p112, %s113, %s114
      %p118 = pneg %p112
      %p119 = scmp.eq.s32.totalorder %s13, 1
      %p120 = por %p118, %p119
      %p121 = scmp.ne.s32.totalorder %s113, %s116
      %p122 = scmp.eq.s32.totalorder %s13, 0
      %p123 = por %p121, %p122
      %p124 = scmp.ne.s32.totalorder %s113, %s116
      %p125 = scmp.eq.s32.totalorder %s18, 1
      %p126 = por %p124, %p125
      %p127 = scmp.ne.s32.totalorder %s116, %s117
      %p128 = scmp.eq.s32.totalorder %s18, 0
      %p129 = por %p127, %p128
      %p130 = scmp.ne.s32.totalorder %s116, %s117
      %p131 = scmp.eq.s32.totalorder %s19, 1
      %p132 = por %p130, %p131
      %p134 = scmp.ne.s32.totalorder %s117, %s133
      %p135 = scmp.eq.s32.totalorder %s19, 0
      %p136 = por %p134, %p135
      %s137 = ssub.s32 %s20, %s32
      %s138 = ssub.s32 %s21, %s28
      %s139 = sor.u32 %s137, %s138
      %p140 = scmp.eq.s32.totalorder %s139, 0
      %s142 = sadd.s32 %s141, 1
      %s143 = scalar_select %p140, %s141, %s142
      %p146 = pneg %p140
      %p147 = scmp.eq.s32.totalorder %s13, 1
      %p148 = por %p146, %p147
      %p149 = scmp.ne.s32.totalorder %s141, %s144
      %p150 = scmp.eq.s32.totalorder %s13, 0
      %p151 = por %p149, %p150
      %p152 = scmp.ne.s32.totalorder %s141, %s144
      %p153 = scmp.eq.s32.totalorder %s18, 1
      %p154 = por %p152, %p153
      %p155 = scmp.ne.s32.totalorder %s144, %s145
      %p156 = scmp.eq.s32.totalorder %s18, 0
      %p157 = por %p155, %p156
      %p158 = scmp.ne.s32.totalorder %s144, %s145
      %p159 = scmp.eq.s32.totalorder %s19, 1
      %p160 = por %p158, %p159
      %p162 = scmp.ne.s32.totalorder %s145, %s161
      %p163 = scmp.eq.s32.totalorder %s19, 0
      %p164 = por %p162, %p163
      %p165 = scmp.le.s32.totalorder 1, %s13
      %p166 = scmp.lt.s32.totalorder %s13, 3
      %p167 = pnand %p165, %p166
      %p168 = pneg %p167
      // Predicated region
      $region9: #{tpu_custom_call.1} parent=5 // pred_check
        _
      $region10: #{tpu_custom_call.1} parent=5 // pred_check_branch
        %170 = sbr.rel (%p167) target = $region12
      $region11: #{tpu_custom_call.1} parent=5 // pred_region
        %s171 = ssub.s32 %s13, 1
        // Predicated region
        $region13: #{tpu_custom_call.1} parent=11 // pred_check
          %p172 = pneg %p77
        $region14: #{tpu_custom_call.1} parent=11 // pred_check_branch
          %174 = sbr.rel (%p172) target = $region16
        $region15: #{tpu_custom_call.1} parent=11 // pred_region
          %p175 = scmp.lt.s32.totalorder %s23, 0
          %s176 = scalar_select %p175, %s23, 0
          %s177 = smul.addr %s176, 4
          %s178 = scalar_lea.vmem %s1, %s177
        $region16: #{tpu_custom_call.1} parent=11 // pred_fallthru
          _
        // Predicated region
        $region17: #{tpu_custom_call.1} parent=11 // pred_check
          %p179 = pneg %p103
        $region18: #{tpu_custom_call.1} parent=11 // pred_check_branch
          %181 = sbr.rel (%p179) target = $region20
        $region19: #{tpu_custom_call.1} parent=11 // pred_region
          %p182 = scmp.lt.s32.totalorder %s23, 0
          %s183 = scalar_select %p182, %s23, 0
          %s184 = scalar_lea.vmem %s2, %s183
        $region20: #{tpu_custom_call.1} parent=11 // pred_fallthru
          _
        // Predicated region
        $region21: #{tpu_custom_call.1} parent=11 // pred_check
          %p185 = pneg %p129
        $region22: #{tpu_custom_call.1} parent=11 // pred_check_branch
          %187 = sbr.rel (%p185) target = $region24
        $region23: #{tpu_custom_call.1} parent=11 // pred_region
          %p188 = scmp.lt.s32.totalorder %s23, 0
          %s189 = scalar_select %p188, %s23, 0
          %s190 = scalar_lea.vmem %s3, %s189
        $region24: #{tpu_custom_call.1} parent=11 // pred_fallthru
          _
      $region12: #{tpu_custom_call.1} parent=5 // pred_fallthru
        _
      %p191 = scmp.lt.s32.totalorder %s13, 2
      // Predicated region
      $region25: #{tpu_custom_call.1} parent=5 // pred_check
        %p192 = pneg %p191
      $region26: #{tpu_custom_call.1} parent=5 // pred_check_branch
        %194 = sbr.rel (%p192) target = $region28
      $region27: #{tpu_custom_call.1} parent=5 // pred_region
        // Predicated region
        $region29: #{tpu_custom_call.1} parent=27 // pred_check
          %p195 = pneg %p45
        $region30: #{tpu_custom_call.1} parent=27 // pred_check_branch
          %197 = sbr.rel (%p195) target = $region32
        $region31: #{tpu_custom_call.1} parent=27 // pred_region
          %s198 = smul.u32 64, %s20
          %p199 = scmp.lt.s32.totalorder %s198, 127
          %s200 = scalar_select %p199, %s198, 127
          %s201 = smul.addr %s200, 4
          %s202 = scalar_lea.vmem %s0, %s201
          %s203 = smul.u32 64, %s20
        $region32: #{tpu_custom_call.1} parent=27 // pred_fallthru
          _
      $region28: #{tpu_custom_call.1} parent=5 // pred_fallthru
        _
      %p204 = scmp.le.s32.totalorder 1, %s13
      %p205 = scmp.lt.s32.totalorder %s13, 3
      %p206 = pnand %p204, %p205
      %p207 = pneg %p206
      // Predicated region
      $region33: #{tpu_custom_call.1} parent=5 // pred_check
        _
      $region34: #{tpu_custom_call.1} parent=5 // pred_check_branch
        %209 = sbr.rel (%p206) target = $region36
      $region35: #{tpu_custom_call.1} parent=5 // pred_region
        %s210 = ssub.s32 %s13, 1
        %s211 = smul.u32 64, %s22
        %p212 = scmp.lt.s32.totalorder %s211, 127
        %s213 = scalar_select %p212, %s211, 127
        %s214 = smul.addr %s213, 4
        %s215 = scalar_lea.vmem %s0, %s214
        %p216 = pneg %p51
        %p217 = pneg %p48
        %p218 = scmp.lt.s32.totalorder %s23, 0
        %s219 = scalar_select %p218, %s23, 0
        %s220 = smul.addr %s219, 4
        %s221 = scalar_lea.vmem %s1, %s220
        %p222 = pneg %p77
        %p223 = pneg %p74
        %p224 = scmp.lt.s32.totalorder %s23, 0
        %s225 = scalar_select %p224, %s23, 0
        %s226 = scalar_lea.vmem %s2, %s225
        %p227 = pneg %p103
        %p228 = pneg %p100
        %p229 = scmp.lt.s32.totalorder %s23, 0
        %s230 = scalar_select %p229, %s23, 0
        %s231 = scalar_lea.vmem %s3, %s230
        %p232 = pneg %p129
        %p233 = pneg %p126
        %p234 = pneg %p157
        %p235 = pneg %p154
        %s236 = sand.u32 %s144, 1
        %s237 = scalar_lea.sflag [#allocation3], %s236
        %s238 = sand.u32 %s144, 1
        %s239 = smul.addr %s238, 512
        %s240 = scalar_lea.vmem [#allocation2], %s239
        %s241 = smul.u32 64, %s22
        %p242 = scmp.lt.s32.totalorder %s241, 127
        %s243 = scalar_select %p242, %s241, 127
        %s244 = smul.addr %s243, 4
        %s245 = scalar_lea.vmem %s0, %s244
        %s246 = smul.u32 64, %s22
        %p247 = scmp.lt.s32.totalorder %s23, 0
        %s248 = scalar_select %p247, %s23, 0
        %s249 = smul.addr %s248, 4
        %s250 = scalar_lea.vmem %s1, %s249
        %p251 = scmp.lt.s32.totalorder %s23, 0
        %s252 = scalar_select %p251, %s23, 0
        %s253 = scalar_lea.vmem %s2, %s252
        %p254 = scmp.lt.s32.totalorder %s23, 0
        %s255 = scalar_select %p254, %s23, 0
        %s256 = scalar_lea.vmem %s3, %s255
        %s257 = smul.u32 64, %s22
        %v259 = vld [vmem:[%s245] sm:$0xf]
        %v260 = vld [vmem:[%s245 + $0x4] sm:$0xf]
        %v261 = vld [vmem:[%s245 + $0x8] sm:$0xf]
        %v262 = vld [vmem:[%s245 + $0xc] sm:$0xf]
        %v263 = vld [vmem:[%s245 + $0x10] sm:$0xf]
        %v264 = vld [vmem:[%s245 + $0x14] sm:$0xf]
        %v265 = vld [vmem:[%s245 + $0x18] sm:$0xf]
        %v266 = vld [vmem:[%s245 + $0x1c] sm:$0xf]
        %v267 = vld [vmem:[%s245 + $0x20] sm:$0xf]
        %v268 = vld [vmem:[%s245 + $0x24] sm:$0xf]
        %v269 = vld [vmem:[%s245 + $0x28] sm:$0xf]
        %v270 = vld [vmem:[%s245 + $0x2c] sm:$0xf]
        %v271 = vld [vmem:[%s245 + $0x30] sm:$0xf]
        %v272 = vld [vmem:[%s245 + $0x34] sm:$0xf]
        %v273 = vld [vmem:[%s245 + $0x38] sm:$0xf]
        %v274 = vld [vmem:[%s245 + $0x3c] sm:$0xf]
        %v275 = vld [vmem:[%s245 + $0x40] sm:$0xf]
        %v276 = vld [vmem:[%s245 + $0x44] sm:$0xf]
        %v277 = vld [vmem:[%s245 + $0x48] sm:$0xf]
        %v278 = vld [vmem:[%s245 + $0x4c] sm:$0xf]
        %v279 = vld [vmem:[%s245 + $0x50] sm:$0xf]
        %v280 = vld [vmem:[%s245 + $0x54] sm:$0xf]
        %v281 = vld [vmem:[%s245 + $0x58] sm:$0xf]
        %v282 = vld [vmem:[%s245 + $0x5c] sm:$0xf]
        %v283 = vld [vmem:[%s245 + $0x60] sm:$0xf]
        %v284 = vld [vmem:[%s245 + $0x64] sm:$0xf]
        %v285 = vld [vmem:[%s245 + $0x68] sm:$0xf]
        %v286 = vld [vmem:[%s245 + $0x6c] sm:$0xf]
        %v287 = vld [vmem:[%s245 + $0x70] sm:$0xf]
        %v288 = vld [vmem:[%s245 + $0x74] sm:$0xf]
        %v289 = vld [vmem:[%s245 + $0x78] sm:$0xf]
        %v290 = vld [vmem:[%s245 + $0x7c] sm:$0xf]
        %v291 = vld [vmem:[%s245 + $0x80] sm:$0xf]
        %v292 = vld [vmem:[%s245 + $0x84] sm:$0xf]
        %v293 = vld [vmem:[%s245 + $0x88] sm:$0xf]
        %v294 = vld [vmem:[%s245 + $0x8c] sm:$0xf]
        %v295 = vld [vmem:[%s245 + $0x90] sm:$0xf]
        %v296 = vld [vmem:[%s245 + $0x94] sm:$0xf]
        %v297 = vld [vmem:[%s245 + $0x98] sm:$0xf]
        %v298 = vld [vmem:[%s245 + $0x9c] sm:$0xf]
        %v299 = vld [vmem:[%s245 + $0xa0] sm:$0xf]
        %v300 = vld [vmem:[%s245 + $0xa4] sm:$0xf]
        %v301 = vld [vmem:[%s245 + $0xa8] sm:$0xf]
        %v302 = vld [vmem:[%s245 + $0xac] sm:$0xf]
        %v303 = vld [vmem:[%s245 + $0xb0] sm:$0xf]
        %v304 = vld [vmem:[%s245 + $0xb4] sm:$0xf]
        %v305 = vld [vmem:[%s245 + $0xb8] sm:$0xf]
        %v306 = vld [vmem:[%s245 + $0xbc] sm:$0xf]
        %v307 = vld [vmem:[%s245 + $0xc0] sm:$0xf]
        %v308 = vld [vmem:[%s245 + $0xc4] sm:$0xf]
        %v309 = vld [vmem:[%s245 + $0xc8] sm:$0xf]
        %v310 = vld [vmem:[%s245 + $0xcc] sm:$0xf]
        %v311 = vld [vmem:[%s245 + $0xd0] sm:$0xf]
        %v312 = vld [vmem:[%s245 + $0xd4] sm:$0xf]
        %v313 = vld [vmem:[%s245 + $0xd8] sm:$0xf]
        %v314 = vld [vmem:[%s245 + $0xdc] sm:$0xf]
        %v315 = vld [vmem:[%s245 + $0xe0] sm:$0xf]
        %v316 = vld [vmem:[%s245 + $0xe4] sm:$0xf]
        %v317 = vld [vmem:[%s245 + $0xe8] sm:$0xf]
        %v318 = vld [vmem:[%s245 + $0xec] sm:$0xf]
        %v319 = vld [vmem:[%s245 + $0xf0] sm:$0xf]
        %v320 = vld [vmem:[%s245 + $0xf4] sm:$0xf]
        %v321 = vld [vmem:[%s245 + $0xf8] sm:$0xf]
        %v322 = vld [vmem:[%s245 + $0xfc] sm:$0xf]
        %v323 = vld [vmem:[%s250] sm:$0xf]
        %v324 = vld [vmem:[%s250 + $0x4] sm:$0x1]
        %v389 = vunpack.c.l.b16 %v259
        %v390 = vunpack.c.l.b16 %v260
        %v391 = vunpack.c.l.b16 %v261
        %v392 = vunpack.c.l.b16 %v262
        %v393 = vunpack.c.l.b16 %v263
        %v394 = vunpack.c.l.b16 %v264
        %v395 = vunpack.c.l.b16 %v265
        %v396 = vunpack.c.l.b16 %v266
        %v397 = vunpack.c.l.b16 %v267
        %v398 = vunpack.c.l.b16 %v268
        %v399 = vunpack.c.l.b16 %v269
        %v400 = vunpack.c.l.b16 %v270
        %v401 = vunpack.c.l.b16 %v271
        %v402 = vunpack.c.l.b16 %v272
        %v403 = vunpack.c.l.b16 %v273
        %v404 = vunpack.c.l.b16 %v274
        %v405 = vunpack.c.l.b16 %v275
        %v406 = vunpack.c.l.b16 %v276
        %v407 = vunpack.c.l.b16 %v277
        %v408 = vunpack.c.l.b16 %v278
        %v409 = vunpack.c.l.b16 %v279
        %v410 = vunpack.c.l.b16 %v280
        %v411 = vunpack.c.l.b16 %v281
        %v412 = vunpack.c.l.b16 %v282
        %v413 = vunpack.c.l.b16 %v283
        %v414 = vunpack.c.l.b16 %v284
        %v415 = vunpack.c.l.b16 %v285
        %v416 = vunpack.c.l.b16 %v286
        %v417 = vunpack.c.l.b16 %v287
        %v418 = vunpack.c.l.b16 %v288
        %v419 = vunpack.c.l.b16 %v289
        %v420 = vunpack.c.l.b16 %v290
        %v421 = vunpack.c.l.b16 %v291
        %v422 = vunpack.c.l.b16 %v292
        %v423 = vunpack.c.l.b16 %v293
        %v424 = vunpack.c.l.b16 %v294
        %v425 = vunpack.c.l.b16 %v295
        %v426 = vunpack.c.l.b16 %v296
        %v427 = vunpack.c.l.b16 %v297
        %v428 = vunpack.c.l.b16 %v298
        %v429 = vunpack.c.l.b16 %v299
        %v430 = vunpack.c.l.b16 %v300
        %v431 = vunpack.c.l.b16 %v301
        %v432 = vunpack.c.l.b16 %v302
        %v433 = vunpack.c.l.b16 %v303
        %v434 = vunpack.c.l.b16 %v304
        %v435 = vunpack.c.l.b16 %v305
        %v436 = vunpack.c.l.b16 %v306
        %v437 = vunpack.c.l.b16 %v307
        %v438 = vunpack.c.l.b16 %v308
        %v439 = vunpack.c.l.b16 %v309
        %v440 = vunpack.c.l.b16 %v310
        %v441 = vunpack.c.l.b16 %v311
        %v442 = vunpack.c.l.b16 %v312
        %v443 = vunpack.c.l.b16 %v313
        %v444 = vunpack.c.l.b16 %v314
        %v445 = vunpack.c.l.b16 %v315
        %v446 = vunpack.c.l.b16 %v316
        %v447 = vunpack.c.l.b16 %v317
        %v448 = vunpack.c.l.b16 %v318
        %v449 = vunpack.c.l.b16 %v319
        %v450 = vunpack.c.l.b16 %v320
        %v451 = vunpack.c.l.b16 %v321
        %v452 = vunpack.c.l.b16 %v322
        %v453 = vpack.c.b16 %v390, %v389
        %v454 = vpack.c.b16 %v392, %v391
        %v455 = vpack.c.b16 %v394, %v393
        %v456 = vpack.c.b16 %v396, %v395
        %v457 = vpack.c.b16 %v398, %v397
        %v458 = vpack.c.b16 %v400, %v399
        %v459 = vpack.c.b16 %v402, %v401
        %v460 = vpack.c.b16 %v404, %v403
        %v461 = vpack.c.b16 %v406, %v405
        %v462 = vpack.c.b16 %v408, %v407
        %v463 = vpack.c.b16 %v410, %v409
        %v464 = vpack.c.b16 %v412, %v411
        %v465 = vpack.c.b16 %v414, %v413
        %v466 = vpack.c.b16 %v416, %v415
        %v467 = vpack.c.b16 %v418, %v417
        %v468 = vpack.c.b16 %v420, %v419
        %v469 = vpack.c.b16 %v422, %v421
        %v470 = vpack.c.b16 %v424, %v423
        %v471 = vpack.c.b16 %v426, %v425
        %v472 = vpack.c.b16 %v428, %v427
        %v473 = vpack.c.b16 %v430, %v429
        %v474 = vpack.c.b16 %v432, %v431
        %v475 = vpack.c.b16 %v434, %v433
        %v476 = vpack.c.b16 %v436, %v435
        %v477 = vpack.c.b16 %v438, %v437
        %v478 = vpack.c.b16 %v440, %v439
        %v479 = vpack.c.b16 %v442, %v441
        %v480 = vpack.c.b16 %v444, %v443
        %v481 = vpack.c.b16 %v446, %v445
        %v482 = vpack.c.b16 %v448, %v447
        %v483 = vpack.c.b16 %v450, %v449
        %v484 = vpack.c.b16 %v452, %v451
        %v487 = vunpack.c.l.b16 %v323
        %v488 = vunpack.c.l.b16 %v324
        %v489 = vpack.c.b16 %v488, %v487
        %vm490 = vcmask 72704
        %v492 = vsel %vm490, %v453, 0
        %v495 = vsel %vm490, %v454, 0
        %v498 = vsel %vm490, %v455, 0
        %v501 = vsel %vm490, %v456, 0
        %v504 = vsel %vm490, %v457, 0
        %v507 = vsel %vm490, %v458, 0
        %v510 = vsel %vm490, %v459, 0
        %v513 = vsel %vm490, %v460, 0
        %v516 = vsel %vm490, %v461, 0
        %v519 = vsel %vm490, %v462, 0
        %v522 = vsel %vm490, %v463, 0
        %v525 = vsel %vm490, %v464, 0
        %v528 = vsel %vm490, %v465, 0
        %v531 = vsel %vm490, %v466, 0
        %v534 = vsel %vm490, %v467, 0
        %v537 = vsel %vm490, %v468, 0
        %v540 = vsel %vm490, %v469, 0
        %v543 = vsel %vm490, %v470, 0
        %v546 = vsel %vm490, %v471, 0
        %v549 = vsel %vm490, %v472, 0
        %v552 = vsel %vm490, %v473, 0
        %v555 = vsel %vm490, %v474, 0
        %v558 = vsel %vm490, %v475, 0
        %v561 = vsel %vm490, %v476, 0
        %v564 = vsel %vm490, %v477, 0
        %v567 = vsel %vm490, %v478, 0
        %v570 = vsel %vm490, %v479, 0
        %v573 = vsel %vm490, %v480, 0
        %v576 = vsel %vm490, %v481, 0
        %v579 = vsel %vm490, %v482, 0
        %v582 = vsel %vm490, %v483, 0
        %v585 = vsel %vm490, %v484, 0
        %vm587 = vcmask 1043456
        %vm588 = vcmask 1044480
        %v589 = vsel %vm587, 4294967295, 65535
        %v590 = vsel %vm588, %v589, 0
        %v592 = vand.u32 %v489, %v590
        %594 = vmatprep.subr.bf16.mxu0 0
        %595 = vmatpush1.bf16.msra.mxu0 0
        %596 = vmatprep.subr.bf16.mxu0 0
        %597 = vmatpush1.bf16.msra.mxu0 0
        %598 = vmatprep.subr.bf16.mxu0 0
        %599 = vmatpush1.bf16.msra.mxu0 0
        %600 = vmatprep.subr.bf16.mxu0 0
        %601 = vmatpush1.bf16.msra.mxu0 0
        %602 = vmatprep.subr.bf16.mxu0 0
        %603 = vmatpush1.bf16.msra.mxu0 0
        %604 = vmatprep.subr.bf16.mxu0 0
        %605 = vmatpush1.bf16.msra.mxu0 0
        %606 = vmatprep.subr.bf16.mxu0 0
        %607 = vmatpush1.bf16.msra.mxu0 0
        %608 = vmatprep.subr.bf16.mxu0 0
        %609 = vmatpush1.bf16.msra.mxu0 %v592
        %610 = vmatprep.subr.bf16.mxu0 0
        %611 = vmatpush2.bf16.msra.mxu0 0
        %612 = vmatprep.subr.bf16.mxu0 0
        %613 = vmatpush2.bf16.msra.mxu0 0
        %614 = vmatprep.subr.bf16.mxu0 0
        %615 = vmatpush2.bf16.msra.mxu0 0
        %616 = vmatprep.subr.bf16.mxu0 0
        %617 = vmatpush2.bf16.msra.mxu0 0
        %618 = vmatprep.subr.bf16.mxu0 0
        %619 = vmatpush2.bf16.msra.mxu0 0
        %620 = vmatprep.subr.bf16.mxu0 0
        %621 = vmatpush2.bf16.msra.mxu0 0
        %622 = vmatprep.subr.bf16.mxu0 0
        %623 = vmatpush2.bf16.msra.mxu0 0
        %624 = vmatprep.subr.bf16.mxu0 0
        %625 = vmatpush2.bf16.msra.mxu0 0
        %626 = vmatprep.mubr.bf16.mxu0 0
        %627 = vmatmul.mubr.bf16.gmra.mxu0 %v492
        %v628 = vpop.f32.mrf.mxu0
        %v629 = vadd.f32 0.0, %v628
        %v630 = vpop.f32.mrf.mxu0
        %v631 = vpop.f32.mrf.mxu0
        %v632 = vadd.f32 0.0, %v631
        %v633 = vpop.f32.mrf.mxu0
        %634 = vmatprep.mubr.bf16.mxu0 0
        %635 = vmatmul.mubr.bf16.gmra.mxu0 %v495
        %v636 = vpop.f32.mrf.mxu0
        %v637 = vadd.f32 0.0, %v636
        %v638 = vpop.f32.mrf.mxu0
        %v639 = vpop.f32.mrf.mxu0
        %v640 = vadd.f32 0.0, %v639
        %v641 = vpop.f32.mrf.mxu0
        %642 = vmatprep.mubr.bf16.mxu0 0
        %643 = vmatmul.mubr.bf16.gmra.mxu0 %v498
        %v644 = vpop.f32.mrf.mxu0
        %v645 = vadd.f32 0.0, %v644
        %v646 = vpop.f32.mrf.mxu0
        %v647 = vpop.f32.mrf.mxu0
        %v648 = vadd.f32 0.0, %v647
        %v649 = vpop.f32.mrf.mxu0
        %650 = vmatprep.mubr.bf16.mxu0 0
        %651 = vmatmul.mubr.bf16.gmra.mxu0 %v501
        %v652 = vpop.f32.mrf.mxu0
        %v653 = vadd.f32 0.0, %v652
        %v654 = vpop.f32.mrf.mxu0
        %v655 = vpop.f32.mrf.mxu0
        %v656 = vadd.f32 0.0, %v655
        %v657 = vpop.f32.mrf.mxu0
        %658 = vmatprep.mubr.bf16.mxu0 0
        %659 = vmatmul.mubr.bf16.gmra.mxu0 %v504
        %v660 = vpop.f32.mrf.mxu0
        %v661 = vadd.f32 0.0, %v660
        %v662 = vpop.f32.mrf.mxu0
        %v663 = vpop.f32.mrf.mxu0
        %v664 = vadd.f32 0.0, %v663
        %v665 = vpop.f32.mrf.mxu0
        %666 = vmatprep.mubr.bf16.mxu0 0
        %667 = vmatmul.mubr.bf16.gmra.mxu0 %v507
        %v668 = vpop.f32.mrf.mxu0
        %v669 = vadd.f32 0.0, %v668
        %v670 = vpop.f32.mrf.mxu0
        %v671 = vpop.f32.mrf.mxu0
        %v672 = vadd.f32 0.0, %v671
        %v673 = vpop.f32.mrf.mxu0
        %674 = vmatprep.mubr.bf16.mxu0 0
        %675 = vmatmul.mubr.bf16.gmra.mxu0 %v510
        %v676 = vpop.f32.mrf.mxu0
        %v677 = vadd.f32 0.0, %v676
        %v678 = vpop.f32.mrf.mxu0
        %v679 = vpop.f32.mrf.mxu0
        %v680 = vadd.f32 0.0, %v679
        %v681 = vpop.f32.mrf.mxu0
        %682 = vmatprep.mubr.bf16.mxu0 0
        %683 = vmatmul.mubr.bf16.gmra.mxu0 %v513
        %v684 = vpop.f32.mrf.mxu0
        %v685 = vadd.f32 0.0, %v684
        %v686 = vpop.f32.mrf.mxu0
        %v687 = vpop.f32.mrf.mxu0
        %v688 = vadd.f32 0.0, %v687
        %v689 = vpop.f32.mrf.mxu0
        %690 = vmatprep.mubr.bf16.mxu0 0
        %691 = vmatmul.mubr.bf16.gmra.mxu0 %v516
        %v692 = vpop.f32.mrf.mxu0
        %v693 = vadd.f32 0.0, %v692
        %v694 = vpop.f32.mrf.mxu0
        %v695 = vpop.f32.mrf.mxu0
        %v696 = vadd.f32 0.0, %v695
        %v697 = vpop.f32.mrf.mxu0
        %698 = vmatprep.mubr.bf16.mxu0 0
        %699 = vmatmul.mubr.bf16.gmra.mxu0 %v519
        %v700 = vpop.f32.mrf.mxu0
        %v701 = vadd.f32 0.0, %v700
        %v702 = vpop.f32.mrf.mxu0
        %v703 = vpop.f32.mrf.mxu0
        %v704 = vadd.f32 0.0, %v703
        %v705 = vpop.f32.mrf.mxu0
        %706 = vmatprep.mubr.bf16.mxu0 0
        %707 = vmatmul.mubr.bf16.gmra.mxu0 %v522
        %v708 = vpop.f32.mrf.mxu0
        %v709 = vadd.f32 0.0, %v708
        %v710 = vpop.f32.mrf.mxu0
        %v711 = vpop.f32.mrf.mxu0
        %v712 = vadd.f32 0.0, %v711
        %v713 = vpop.f32.mrf.mxu0
        %714 = vmatprep.mubr.bf16.mxu0 0
        %715 = vmatmul.mubr.bf16.gmra.mxu0 %v525
        %v716 = vpop.f32.mrf.mxu0
        %v717 = vadd.f32 0.0, %v716
        %v718 = vpop.f32.mrf.mxu0
        %v719 = vpop.f32.mrf.mxu0
        %v720 = vadd.f32 0.0, %v719
        %v721 = vpop.f32.mrf.mxu0
        %722 = vmatprep.mubr.bf16.mxu0 0
        %723 = vmatmul.mubr.bf16.gmra.mxu0 %v528
        %v724 = vpop.f32.mrf.mxu0
        %v725 = vadd.f32 0.0, %v724
        %v726 = vpop.f32.mrf.mxu0
        %v727 = vpop.f32.mrf.mxu0
        %v728 = vadd.f32 0.0, %v727
        %v729 = vpop.f32.mrf.mxu0
        %730 = vmatprep.mubr.bf16.mxu0 0
        %731 = vmatmul.mubr.bf16.gmra.mxu0 %v531
        %v732 = vpop.f32.mrf.mxu0
        %v733 = vadd.f32 0.0, %v732
        %v734 = vpop.f32.mrf.mxu0
        %v735 = vpop.f32.mrf.mxu0
        %v736 = vadd.f32 0.0, %v735
        %v737 = vpop.f32.mrf.mxu0
        %738 = vmatprep.mubr.bf16.mxu0 0
        %739 = vmatmul.mubr.bf16.gmra.mxu0 %v534
        %v740 = vpop.f32.mrf.mxu0
        %v741 = vadd.f32 0.0, %v740
        %v742 = vpop.f32.mrf.mxu0
        %v743 = vpop.f32.mrf.mxu0
        %v744 = vadd.f32 0.0, %v743
        %v745 = vpop.f32.mrf.mxu0
        %746 = vmatprep.mubr.bf16.mxu0 0
        %747 = vmatmul.mubr.bf16.gmra.mxu0 %v537
        %v748 = vpop.f32.mrf.mxu0
        %v749 = vadd.f32 0.0, %v748
        %v750 = vpop.f32.mrf.mxu0
        %v751 = vpop.f32.mrf.mxu0
        %v752 = vadd.f32 0.0, %v751
        %v753 = vpop.f32.mrf.mxu0
        %754 = vmatprep.mubr.bf16.mxu0 0
        %755 = vmatmul.mubr.bf16.gmra.mxu0 %v540
        %v756 = vpop.f32.mrf.mxu0
        %v757 = vadd.f32 0.0, %v756
        %v758 = vpop.f32.mrf.mxu0
        %v759 = vpop.f32.mrf.mxu0
        %v760 = vadd.f32 0.0, %v759
        %v761 = vpop.f32.mrf.mxu0
        %762 = vmatprep.mubr.bf16.mxu0 0
        %763 = vmatmul.mubr.bf16.gmra.mxu0 %v543
        %v764 = vpop.f32.mrf.mxu0
        %v765 = vadd.f32 0.0, %v764
        %v766 = vpop.f32.mrf.mxu0
        %v767 = vpop.f32.mrf.mxu0
        %v768 = vadd.f32 0.0, %v767
        %v769 = vpop.f32.mrf.mxu0
        %770 = vmatprep.mubr.bf16.mxu0 0
        %771 = vmatmul.mubr.bf16.gmra.mxu0 %v546
        %v772 = vpop.f32.mrf.mxu0
        %v773 = vadd.f32 0.0, %v772
        %v774 = vpop.f32.mrf.mxu0
        %v775 = vpop.f32.mrf.mxu0
        %v776 = vadd.f32 0.0, %v775
        %v777 = vpop.f32.mrf.mxu0
        %778 = vmatprep.mubr.bf16.mxu0 0
        %779 = vmatmul.mubr.bf16.gmra.mxu0 %v549
        %v780 = vpop.f32.mrf.mxu0
        %v781 = vadd.f32 0.0, %v780
        %v782 = vpop.f32.mrf.mxu0
        %v783 = vpop.f32.mrf.mxu0
        %v784 = vadd.f32 0.0, %v783
        %v785 = vpop.f32.mrf.mxu0
        %786 = vmatprep.mubr.bf16.mxu0 0
        %787 = vmatmul.mubr.bf16.gmra.mxu0 %v552
        %v788 = vpop.f32.mrf.mxu0
        %v789 = vadd.f32 0.0, %v788
        %v790 = vpop.f32.mrf.mxu0
        %v791 = vpop.f32.mrf.mxu0
        %v792 = vadd.f32 0.0, %v791
        %v793 = vpop.f32.mrf.mxu0
        %794 = vmatprep.mubr.bf16.mxu0 0
        %795 = vmatmul.mubr.bf16.gmra.mxu0 %v555
        %v796 = vpop.f32.mrf.mxu0
        %v797 = vadd.f32 0.0, %v796
        %v798 = vpop.f32.mrf.mxu0
        %v799 = vpop.f32.mrf.mxu0
        %v800 = vadd.f32 0.0, %v799
        %v801 = vpop.f32.mrf.mxu0
        %802 = vmatprep.mubr.bf16.mxu0 0
        %803 = vmatmul.mubr.bf16.gmra.mxu0 %v558
        %v804 = vpop.f32.mrf.mxu0
        %v805 = vadd.f32 0.0, %v804
        %v806 = vpop.f32.mrf.mxu0
        %v807 = vpop.f32.mrf.mxu0
        %v808 = vadd.f32 0.0, %v807
        %v809 = vpop.f32.mrf.mxu0
        %810 = vmatprep.mubr.bf16.mxu0 0
        %811 = vmatmul.mubr.bf16.gmra.mxu0 %v561
        %v812 = vpop.f32.mrf.mxu0
        %v813 = vadd.f32 0.0, %v812
        %v814 = vpop.f32.mrf.mxu0
        %v815 = vpop.f32.mrf.mxu0
        %v816 = vadd.f32 0.0, %v815
        %v817 = vpop.f32.mrf.mxu0
        %818 = vmatprep.mubr.bf16.mxu0 0
        %819 = vmatmul.mubr.bf16.gmra.mxu0 %v564
        %v820 = vpop.f32.mrf.mxu0
        %v821 = vadd.f32 0.0, %v820
        %v822 = vpop.f32.mrf.mxu0
        %v823 = vpop.f32.mrf.mxu0
        %v824 = vadd.f32 0.0, %v823
        %v825 = vpop.f32.mrf.mxu0
        %826 = vmatprep.mubr.bf16.mxu0 0
        %827 = vmatmul.mubr.bf16.gmra.mxu0 %v567
        %v828 = vpop.f32.mrf.mxu0
        %v829 = vadd.f32 0.0, %v828
        %v830 = vpop.f32.mrf.mxu0
        %v831 = vpop.f32.mrf.mxu0
        %v832 = vadd.f32 0.0, %v831
        %v833 = vpop.f32.mrf.mxu0
        %834 = vmatprep.mubr.bf16.mxu0 0
        %835 = vmatmul.mubr.bf16.gmra.mxu0 %v570
        %v836 = vpop.f32.mrf.mxu0
        %v837 = vadd.f32 0.0, %v836
        %v838 = vpop.f32.mrf.mxu0
        %v839 = vpop.f32.mrf.mxu0
        %v840 = vadd.f32 0.0, %v839
        %v841 = vpop.f32.mrf.mxu0
        %842 = vmatprep.mubr.bf16.mxu0 0
        %843 = vmatmul.mubr.bf16.gmra.mxu0 %v573
        %v844 = vpop.f32.mrf.mxu0
        %v845 = vadd.f32 0.0, %v844
        %v846 = vpop.f32.mrf.mxu0
        %v847 = vpop.f32.mrf.mxu0
        %v848 = vadd.f32 0.0, %v847
        %v849 = vpop.f32.mrf.mxu0
        %850 = vmatprep.mubr.bf16.mxu0 0
        %851 = vmatmul.mubr.bf16.gmra.mxu0 %v576
        %v852 = vpop.f32.mrf.mxu0
        %v853 = vadd.f32 0.0, %v852
        %v854 = vpop.f32.mrf.mxu0
        %v855 = vpop.f32.mrf.mxu0
        %v856 = vadd.f32 0.0, %v855
        %v857 = vpop.f32.mrf.mxu0
        %858 = vmatprep.mubr.bf16.mxu0 0
        %859 = vmatmul.mubr.bf16.gmra.mxu0 %v579
        %v860 = vpop.f32.mrf.mxu0
        %v861 = vadd.f32 0.0, %v860
        %v862 = vpop.f32.mrf.mxu0
        %v863 = vpop.f32.mrf.mxu0
        %v864 = vadd.f32 0.0, %v863
        %v865 = vpop.f32.mrf.mxu0
        %866 = vmatprep.mubr.bf16.mxu0 0
        %867 = vmatmul.mubr.bf16.gmra.mxu0 %v582
        %v868 = vpop.f32.mrf.mxu0
        %v869 = vadd.f32 0.0, %v868
        %v870 = vpop.f32.mrf.mxu0
        %v871 = vpop.f32.mrf.mxu0
        %v872 = vadd.f32 0.0, %v871
        %v873 = vpop.f32.mrf.mxu0
        %874 = vmatprep.mubr.bf16.mxu0 0
        %875 = vmatmul.mubr.bf16.gmra.mxu0 %v585
        %v876 = vpop.f32.mrf.mxu0
        %v877 = vadd.f32 0.0, %v876
        %v878 = vpop.f32.mrf.mxu0
        %v879 = vpop.f32.mrf.mxu0
        %v880 = vadd.f32 0.0, %v879
        %v881 = vpop.f32.mrf.mxu0
        %882 = vdwg.mxu0
        %v883 = vld [vmem:[%s253] sm:$0x1]
        %v885 = vlaneseq
        %v886 = vshrl.u32 %v885, 7
        %v887 = vsub.s32 0, %v886
        %v888 = vrot.slane %v883, %v887
        %v890 = vmul.f32 %v629, %v888
        %v891 = vmul.f32 %v632, %v888
        %v892 = vmul.f32 %v637, %v888
        %v893 = vmul.f32 %v640, %v888
        %v894 = vmul.f32 %v645, %v888
        %v895 = vmul.f32 %v648, %v888
        %v896 = vmul.f32 %v653, %v888
        %v897 = vmul.f32 %v656, %v888
        %v898 = vmul.f32 %v661, %v888
        %v899 = vmul.f32 %v664, %v888
        %v900 = vmul.f32 %v669, %v888
        %v901 = vmul.f32 %v672, %v888
        %v902 = vmul.f32 %v677, %v888
        %v903 = vmul.f32 %v680, %v888
        %v904 = vmul.f32 %v685, %v888
        %v905 = vmul.f32 %v688, %v888
        %v906 = vmul.f32 %v693, %v888
        %v907 = vmul.f32 %v696, %v888
        %v908 = vmul.f32 %v701, %v888
        %v909 = vmul.f32 %v704, %v888
        %v910 = vmul.f32 %v709, %v888
        %v911 = vmul.f32 %v712, %v888
        %v912 = vmul.f32 %v717, %v888
        %v913 = vmul.f32 %v720, %v888
        %v914 = vmul.f32 %v725, %v888
        %v915 = vmul.f32 %v728, %v888
        %v916 = vmul.f32 %v733, %v888
        %v917 = vmul.f32 %v736, %v888
        %v918 = vmul.f32 %v741, %v888
        %v919 = vmul.f32 %v744, %v888
        %v920 = vmul.f32 %v749, %v888
        %v921 = vmul.f32 %v752, %v888
        %v922 = vmul.f32 %v757, %v888
        %v923 = vmul.f32 %v760, %v888
        %v924 = vmul.f32 %v765, %v888
        %v925 = vmul.f32 %v768, %v888
        %v926 = vmul.f32 %v773, %v888
        %v927 = vmul.f32 %v776, %v888
        %v928 = vmul.f32 %v781, %v888
        %v929 = vmul.f32 %v784, %v888
        %v930 = vmul.f32 %v789, %v888
        %v931 = vmul.f32 %v792, %v888
        %v932 = vmul.f32 %v797, %v888
        %v933 = vmul.f32 %v800, %v888
        %v934 = vmul.f32 %v805, %v888
        %v935 = vmul.f32 %v808, %v888
        %v936 = vmul.f32 %v813, %v888
        %v937 = vmul.f32 %v816, %v888
        %v938 = vmul.f32 %v821, %v888
        %v939 = vmul.f32 %v824, %v888
        %v940 = vmul.f32 %v829, %v888
        %v941 = vmul.f32 %v832, %v888
        %v942 = vmul.f32 %v837, %v888
        %v943 = vmul.f32 %v840, %v888
        %v944 = vmul.f32 %v845, %v888
        %v945 = vmul.f32 %v848, %v888
        %v946 = vmul.f32 %v853, %v888
        %v947 = vmul.f32 %v856, %v888
        %v948 = vmul.f32 %v861, %v888
        %v949 = vmul.f32 %v864, %v888
        %v950 = vmul.f32 %v869, %v888
        %v951 = vmul.f32 %v872, %v888
        %v952 = vmul.f32 %v877, %v888
        %v953 = vmul.f32 %v880, %v888
        %v954 = vld [vmem:[%s256] sm:$0x1]
        %v956 = vlaneseq
        %v957 = vshrl.u32 %v956, 7
        %v958 = vsub.s32 0, %v957
        %v959 = vrot.slane %v954, %v958
        %v961 = vadd.f32 %v890, %v959
        %v962 = vadd.f32 %v891, %v959
        %v963 = vadd.f32 %v892, %v959
        %v964 = vadd.f32 %v893, %v959
        %v965 = vadd.f32 %v894, %v959
        %v966 = vadd.f32 %v895, %v959
        %v967 = vadd.f32 %v896, %v959
        %v968 = vadd.f32 %v897, %v959
        %v969 = vadd.f32 %v898, %v959
        %v970 = vadd.f32 %v899, %v959
        %v971 = vadd.f32 %v900, %v959
        %v972 = vadd.f32 %v901, %v959
        %v973 = vadd.f32 %v902, %v959
        %v974 = vadd.f32 %v903, %v959
        %v975 = vadd.f32 %v904, %v959
        %v976 = vadd.f32 %v905, %v959
        %v977 = vadd.f32 %v906, %v959
        %v978 = vadd.f32 %v907, %v959
        %v979 = vadd.f32 %v908, %v959
        %v980 = vadd.f32 %v909, %v959
        %v981 = vadd.f32 %v910, %v959
        %v982 = vadd.f32 %v911, %v959
        %v983 = vadd.f32 %v912, %v959
        %v984 = vadd.f32 %v913, %v959
        %v985 = vadd.f32 %v914, %v959
        %v986 = vadd.f32 %v915, %v959
        %v987 = vadd.f32 %v916, %v959
        %v988 = vadd.f32 %v917, %v959
        %v989 = vadd.f32 %v918, %v959
        %v990 = vadd.f32 %v919, %v959
        %v991 = vadd.f32 %v920, %v959
        %v992 = vadd.f32 %v921, %v959
        %v993 = vadd.f32 %v922, %v959
        %v994 = vadd.f32 %v923, %v959
        %v995 = vadd.f32 %v924, %v959
        %v996 = vadd.f32 %v925, %v959
        %v997 = vadd.f32 %v926, %v959
        %v998 = vadd.f32 %v927, %v959
        %v999 = vadd.f32 %v928, %v959
        %v1000 = vadd.f32 %v929, %v959
        %v1001 = vadd.f32 %v930, %v959
        %v1002 = vadd.f32 %v931, %v959
        %v1003 = vadd.f32 %v932, %v959
        %v1004 = vadd.f32 %v933, %v959
        %v1005 = vadd.f32 %v934, %v959
        %v1006 = vadd.f32 %v935, %v959
        %v1007 = vadd.f32 %v936, %v959
        %v1008 = vadd.f32 %v937, %v959
        %v1009 = vadd.f32 %v938, %v959
        %v1010 = vadd.f32 %v939, %v959
        %v1011 = vadd.f32 %v940, %v959
        %v1012 = vadd.f32 %v941, %v959
        %v1013 = vadd.f32 %v942, %v959
        %v1014 = vadd.f32 %v943, %v959
        %v1015 = vadd.f32 %v944, %v959
        %v1016 = vadd.f32 %v945, %v959
        %v1017 = vadd.f32 %v946, %v959
        %v1018 = vadd.f32 %v947, %v959
        %v1019 = vadd.f32 %v948, %v959
        %v1020 = vadd.f32 %v949, %v959
        %v1021 = vadd.f32 %v950, %v959
        %v1022 = vadd.f32 %v951, %v959
        %v1023 = vadd.f32 %v952, %v959
        %v1024 = vadd.f32 %v953, %v959
        %v1025 = vmax.f32 %v961, 0.0
        %v1026 = vmax.f32 %v962, 0.0
        %v1027 = vmax.f32 %v963, 0.0
        %v1028 = vmax.f32 %v964, 0.0
        %v1029 = vmax.f32 %v965, 0.0
        %v1030 = vmax.f32 %v966, 0.0
        %v1031 = vmax.f32 %v967, 0.0
        %v1032 = vmax.f32 %v968, 0.0
        %v1033 = vmax.f32 %v969, 0.0
        %v1034 = vmax.f32 %v970, 0.0
        %v1035 = vmax.f32 %v971, 0.0
        %v1036 = vmax.f32 %v972, 0.0
        %v1037 = vmax.f32 %v973, 0.0
        %v1038 = vmax.f32 %v974, 0.0
        %v1039 = vmax.f32 %v975, 0.0
        %v1040 = vmax.f32 %v976, 0.0
        %v1041 = vmax.f32 %v977, 0.0
        %v1042 = vmax.f32 %v978, 0.0
        %v1043 = vmax.f32 %v979, 0.0
        %v1044 = vmax.f32 %v980, 0.0
        %v1045 = vmax.f32 %v981, 0.0
        %v1046 = vmax.f32 %v982, 0.0
        %v1047 = vmax.f32 %v983, 0.0
        %v1048 = vmax.f32 %v984, 0.0
        %v1049 = vmax.f32 %v985, 0.0
        %v1050 = vmax.f32 %v986, 0.0
        %v1051 = vmax.f32 %v987, 0.0
        %v1052 = vmax.f32 %v988, 0.0
        %v1053 = vmax.f32 %v989, 0.0
        %v1054 = vmax.f32 %v990, 0.0
        %v1055 = vmax.f32 %v991, 0.0
        %v1056 = vmax.f32 %v992, 0.0
        %v1057 = vmax.f32 %v993, 0.0
        %v1058 = vmax.f32 %v994, 0.0
        %v1059 = vmax.f32 %v995, 0.0
        %v1060 = vmax.f32 %v996, 0.0
        %v1061 = vmax.f32 %v997, 0.0
        %v1062 = vmax.f32 %v998, 0.0
        %v1063 = vmax.f32 %v999, 0.0
        %v1064 = vmax.f32 %v1000, 0.0
        %v1065 = vmax.f32 %v1001, 0.0
        %v1066 = vmax.f32 %v1002, 0.0
        %v1067 = vmax.f32 %v1003, 0.0
        %v1068 = vmax.f32 %v1004, 0.0
        %v1069 = vmax.f32 %v1005, 0.0
        %v1070 = vmax.f32 %v1006, 0.0
        %v1071 = vmax.f32 %v1007, 0.0
        %v1072 = vmax.f32 %v1008, 0.0
        %v1073 = vmax.f32 %v1009, 0.0
        %v1074 = vmax.f32 %v1010, 0.0
        %v1075 = vmax.f32 %v1011, 0.0
        %v1076 = vmax.f32 %v1012, 0.0
        %v1077 = vmax.f32 %v1013, 0.0
        %v1078 = vmax.f32 %v1014, 0.0
        %v1079 = vmax.f32 %v1015, 0.0
        %v1080 = vmax.f32 %v1016, 0.0
        %v1081 = vmax.f32 %v1017, 0.0
        %v1082 = vmax.f32 %v1018, 0.0
        %v1083 = vmax.f32 %v1019, 0.0
        %v1084 = vmax.f32 %v1020, 0.0
        %v1085 = vmax.f32 %v1021, 0.0
        %v1086 = vmax.f32 %v1022, 0.0
        %v1087 = vmax.f32 %v1023, 0.0
        %v1088 = vmax.f32 %v1024, 0.0
        %1089 = vst [vmem:[%s240] sm:$0xff] %v1025
        %1090 = vst [vmem:[%s240 + $0x8] sm:$0xff] %v1026
        %1091 = vst [vmem:[%s240 + $0x10] sm:$0xff] %v1027
        %1092 = vst [vmem:[%s240 + $0x18] sm:$0xff] %v1028
        %1093 = vst [vmem:[%s240 + $0x20] sm:$0xff] %v1029
        %1094 = vst [vmem:[%s240 + $0x28] sm:$0xff] %v1030
        %1095 = vst [vmem:[%s240 + $0x30] sm:$0xff] %v1031
        %1096 = vst [vmem:[%s240 + $0x38] sm:$0xff] %v1032
        %1097 = vst [vmem:[%s240 + $0x40] sm:$0xff] %v1033
        %1098 = vst [vmem:[%s240 + $0x48] sm:$0xff] %v1034
        %1099 = vst [vmem:[%s240 + $0x50] sm:$0xff] %v1035
        %1100 = vst [vmem:[%s240 + $0x58] sm:$0xff] %v1036
        %1101 = vst [vmem:[%s240 + $0x60] sm:$0xff] %v1037
        %1102 = vst [vmem:[%s240 + $0x68] sm:$0xff] %v1038
        %1103 = vst [vmem:[%s240 + $0x70] sm:$0xff] %v1039
        %1104 = vst [vmem:[%s240 + $0x78] sm:$0xff] %v1040
        %1105 = vst [vmem:[%s240 + $0x80] sm:$0xff] %v1041
        %1106 = vst [vmem:[%s240 + $0x88] sm:$0xff] %v1042
        %1107 = vst [vmem:[%s240 + $0x90] sm:$0xff] %v1043
        %1108 = vst [vmem:[%s240 + $0x98] sm:$0xff] %v1044
        %1109 = vst [vmem:[%s240 + $0xa0] sm:$0xff] %v1045
        %1110 = vst [vmem:[%s240 + $0xa8] sm:$0xff] %v1046
        %1111 = vst [vmem:[%s240 + $0xb0] sm:$0xff] %v1047
        %1112 = vst [vmem:[%s240 + $0xb8] sm:$0xff] %v1048
        %1113 = vst [vmem:[%s240 + $0xc0] sm:$0xff] %v1049
        %1114 = vst [vmem:[%s240 + $0xc8] sm:$0xff] %v1050
        %1115 = vst [vmem:[%s240 + $0xd0] sm:$0xff] %v1051
        %1116 = vst [vmem:[%s240 + $0xd8] sm:$0xff] %v1052
        %1117 = vst [vmem:[%s240 + $0xe0] sm:$0xff] %v1053
        %1118 = vst [vmem:[%s240 + $0xe8] sm:$0xff] %v1054
        %1119 = vst [vmem:[%s240 + $0xf0] sm:$0xff] %v1055
        %1120 = vst [vmem:[%s240 + $0xf8] sm:$0xff] %v1056
        %1121 = vst [vmem:[%s240 + $0x100] sm:$0xff] %v1057
        %1122 = vst [vmem:[%s240 + $0x108] sm:$0xff] %v1058
        %1123 = vst [vmem:[%s240 + $0x110] sm:$0xff] %v1059
        %1124 = vst [vmem:[%s240 + $0x118] sm:$0xff] %v1060
        %1125 = vst [vmem:[%s240 + $0x120] sm:$0xff] %v1061
        %1126 = vst [vmem:[%s240 + $0x128] sm:$0xff] %v1062
        %1127 = vst [vmem:[%s240 + $0x130] sm:$0xff] %v1063
        %1128 = vst [vmem:[%s240 + $0x138] sm:$0xff] %v1064
        %1129 = vst [vmem:[%s240 + $0x140] sm:$0xff] %v1065
        %1130 = vst [vmem:[%s240 + $0x148] sm:$0xff] %v1066
        %1131 = vst [vmem:[%s240 + $0x150] sm:$0xff] %v1067
        %1132 = vst [vmem:[%s240 + $0x158] sm:$0xff] %v1068
        %1133 = vst [vmem:[%s240 + $0x160] sm:$0xff] %v1069
        %1134 = vst [vmem:[%s240 + $0x168] sm:$0xff] %v1070
        %1135 = vst [vmem:[%s240 + $0x170] sm:$0xff] %v1071
        %1136 = vst [vmem:[%s240 + $0x178] sm:$0xff] %v1072
        %1137 = vst [vmem:[%s240 + $0x180] sm:$0xff] %v1073
        %1138 = vst [vmem:[%s240 + $0x188] sm:$0xff] %v1074
        %1139 = vst [vmem:[%s240 + $0x190] sm:$0xff] %v1075
        %1140 = vst [vmem:[%s240 + $0x198] sm:$0xff] %v1076
        %1141 = vst [vmem:[%s240 + $0x1a0] sm:$0xff] %v1077
        %1142 = vst [vmem:[%s240 + $0x1a8] sm:$0xff] %v1078
        %1143 = vst [vmem:[%s240 + $0x1b0] sm:$0xff] %v1079
        %1144 = vst [vmem:[%s240 + $0x1b8] sm:$0xff] %v1080
        %1145 = vst [vmem:[%s240 + $0x1c0] sm:$0xff] %v1081
        %1146 = vst [vmem:[%s240 + $0x1c8] sm:$0xff] %v1082
        %1147 = vst [vmem:[%s240 + $0x1d0] sm:$0xff] %v1083
        %1148 = vst [vmem:[%s240 + $0x1d8] sm:$0xff] %v1084
        %1149 = vst [vmem:[%s240 + $0x1e0] sm:$0xff] %v1085
        %1150 = vst [vmem:[%s240 + $0x1e8] sm:$0xff] %v1086
        %1151 = vst [vmem:[%s240 + $0x1f0] sm:$0xff] %v1087
        %1152 = vst [vmem:[%s240 + $0x1f8] sm:$0xff] %v1088
        %s1153 = sand.u32 %s144, 1
        %s1154 = scalar_lea.sflag [#allocation3], %s1153
        %s1155 = sand.u32 %s144, 1
        %s1156 = smul.addr %s1155, 512
        %s1157 = scalar_lea.vmem [#allocation2], %s1156
        // Predicated region
        $region37: #{tpu_custom_call.1} parent=35 // pred_check
          %p1158 = pneg %p154
        $region38: #{tpu_custom_call.1} parent=35 // pred_check_branch
          %1160 = sbr.rel (%p1158) target = $region40
        $region39: #{tpu_custom_call.1} parent=35 // pred_region
          %s1161 = smul.u32 64, %s22
          %s1163 = ssub.s32 8192, 8192
          %1164 = vsyncadd %s1154, %s1163
          %s1165 = sadd.s32 %s23, %s1161
          %s1166 = smul.addr %s1165, 128
          %s1167 = scalar_lea.hbm %s4, %s1166
          %s1168 = sshll.u32 %s1157, 4
          %s1169 = int_to_ptr.vmem [resolvable:$true] %s1168
          %1174 = dma.vmem_to_hbm [thread:$0]  %s1169, 8192, %s1167, %s1154, 128, 128, 8
        $region40: #{tpu_custom_call.1} parent=35 // pred_fallthru
          _
      $region36: #{tpu_custom_call.1} parent=5 // pred_fallthru
        _
      %p1175 = scmp.le.s32.totalorder 2, %s13
      // Predicated region
      $region41: #{tpu_custom_call.1} parent=5 // pred_check
        %p1176 = pneg %p1175
      $region42: #{tpu_custom_call.1} parent=5 // pred_check_branch
        %1178 = sbr.rel (%p1176) target = $region44
      $region43: #{tpu_custom_call.1} parent=5 // pred_region
        %s1179 = ssub.s32 %s13, 2
        // Predicated region
        $region45: #{tpu_custom_call.1} parent=43 // pred_check
          %p1180 = pneg %p160
        $region46: #{tpu_custom_call.1} parent=43 // pred_check_branch
          %1182 = sbr.rel (%p1180) target = $region48
        $region47: #{tpu_custom_call.1} parent=43 // pred_region
          %s1183 = sand.u32 %s145, 1
          %s1184 = scalar_lea.sflag [#allocation3], %s1183
          %s1185 = sand.u32 %s145, 1
          %s1186 = smul.addr %s1185, 512
          %s1187 = scalar_lea.vmem [#allocation2], %s1186
          %1188 = dma.done %s1184, 8192
        $region48: #{tpu_custom_call.1} parent=43 // pred_fallthru
          _
      $region44: #{tpu_custom_call.1} parent=5 // pred_fallthru
        _
    $region6: #{tpu_custom_call.1} parent=1 // loop_footer
      %s17 = sadd.s32 1, %s13
    $region7: #{tpu_custom_call.1} parent=1 // loop_footer_branch
      %12 = sbr.rel target = $region3
    $region8: #{tpu_custom_call.1} parent=1 // loop_exit
      _
    %1189 = vsyncpa [#allocation3], 1
    %s1190 = scalar_lea.sflag [#allocation3], 1
    %1191 = vsyncpa %s1190, 1

</llo_original>
